<compile_context>
chip_gen: v5e
topology: v5e:2x2
jax: 0.10.0
libtpu: 0.0.40
codegen_flags: <defaults>
</compile_context>

<pallas_src>
import jax
import jax.numpy as jnp
from jax.experimental import pallas as pl
from jax.experimental.pallas import tpu as pltpu

_LANE = 128
_SUBLANE_MULT = 32            # covers native sublane packing for f32/bf16/int8
_SINGLE_BLOCK_BYTES = 1 << 20  # below this: one full-extent block (no pipelining win)


def _copy_kernel(x_ref, o_ref):
    # Pure pass-through: one unmasked full-tile load + store per grid step.
    o_ref[...] = x_ref[...]


def _copy_2d(x2, tr, *, parallel=True, donate=False):
    """Tiled (rows, 128) copy.  tr = rows per grid step."""
    rows, lanes = x2.shape
    itemsize = jnp.dtype(x2.dtype).itemsize
    tile_bytes = tr * lanes * itemsize
    # 2 operands x 2 pipeline buffers = 4x tile, plus slack; capped safely below
    # v7x's 64 MiB physical VMEM, floored at 32 MiB (raises v5e's 16 MiB default).
    vmem_limit = int(max(32 << 20, min(4 * tile_bytes + (4 << 20), 48 << 20)))
    kwargs = {}
    if donate:
        kwargs["input_output_aliases"] = {0: 0}
    return pl.pallas_call(
        _copy_kernel,
        out_shape=jax.ShapeDtypeStruct((rows, lanes), x2.dtype),
        grid=(pl.cdiv(rows, tr),),
        in_specs=[pl.BlockSpec((tr, lanes), lambda i: (i, 0))],
        out_specs=pl.BlockSpec((tr, lanes), lambda i: (i, 0)),
        compiler_params=pltpu.CompilerParams(
            dimension_semantics=("parallel" if parallel else "arbitrary",),
            vmem_limit_bytes=vmem_limit),
        **kwargs,
    )(x2)


def identity(x, *, target_block_bytes=4 << 20, donate=False):
    """Pallas identity: returns an array equal to x (EmptyModule.forward)."""
    orig_shape = x.shape
    n = x.size
    if n == 0:
        return x
    dtype = x.dtype
    itemsize = jnp.dtype(dtype).itemsize

    xf = x.reshape(-1)
    rows = n // _LANE
    rem = n - rows * _LANE

    pieces = []
    if rows > 0:
        # Lane-dense main region: unmasked full-lane vld/vst.
        x2 = xf[: rows * _LANE].reshape(rows, _LANE)
        total_bytes = rows * _LANE * itemsize
        if total_bytes <= _SINGLE_BLOCK_BYTES:
            tr = rows  # single full-extent block (exempt from the (8,128) rule)
        else:
            # Tile sized by bytes, 32-sublane aligned, never zero.
            tile_rows = max(
                _SUBLANE_MULT,
                (max(1, target_block_bytes) // (_LANE * itemsize)
                 // _SUBLANE_MULT) * _SUBLANE_MULT)
            # Force >= 2 grid steps so read/write DMAs of adjacent steps overlap.
            half_rows = max(
                _SUBLANE_MULT,
                (((rows + 1) // 2) // _SUBLANE_MULT) * _SUBLANE_MULT)
            tr = min(tile_rows, half_rows)
        out2 = _copy_2d(x2, tr, parallel=True, donate=donate and rem == 0)
        pieces.append(out2.reshape(rows * _LANE))

    if rem > 0:
        # Tiny (<128 elem) tail: single full-extent block; masked stores here
        # are negligible and this keeps the bulk of the array lane-dense.
        xt = xf[rows * _LANE:].reshape(1, rem)
        outt = pl.pallas_call(
            _copy_kernel,
            out_shape=jax.ShapeDtypeStruct((1, rem), dtype),
            grid=(1,),
            in_specs=[pl.BlockSpec((1, rem), lambda i: (0, 0))],
            out_specs=pl.BlockSpec((1, rem), lambda i: (0, 0)),
            compiler_params=pltpu.CompilerParams(
                dimension_semantics=("arbitrary",)),
        )(xt)
        pieces.append(outt.reshape(rem))

    out_flat = pieces[0] if len(pieces) == 1 else jnp.concatenate(pieces, axis=0)
    return out_flat.reshape(orig_shape)


if __name__ == "__main__":
    key = jax.random.PRNGKey(0)

    # Nominal module-shaped input (small): single full-extent block path.
    x = jax.random.normal(key, (2, 4, 16, 16), dtype=jnp.float32)
    out = jax.block_until_ready(identity(x))
    assert out.shape == x.shape and out.dtype == x.dtype
    assert jnp.array_equal(out, x), "identity mismatch (main path)"

    # Ragged input (105 elements, not divisible by 128): tail-only path.
    k1, k2, k3 = jax.random.split(key, 3)
    xr = jax.random.normal(k1, (3, 5, 7), dtype=jnp.float32)
    outr = jax.block_until_ready(identity(xr))
    assert jnp.array_equal(outr, xr), "identity mismatch (ragged path)"

    # bf16 input: exercises per-dtype handling.
    xb = jax.random.normal(k2, (4, 8, 32), dtype=jnp.float32).astype(jnp.bfloat16)
    outb = jax.block_until_ready(identity(xb))
    assert jnp.array_equal(outb, xb), "identity mismatch (bf16 path)"

    # 2 MiB f32 input: exercises the tiled (>=2 grid steps) pipelined path.
    xl = jax.random.normal(k3, (512, 1024), dtype=jnp.float32)
    outl = jax.block_until_ready(identity(xl))
    assert jnp.array_equal(outl, xl), "identity mismatch (tiled path)"

    print("KERNEL_OK")
</pallas_src>

<mosaic_0001>
module attributes {stable_mosaic.version = 11 : i64} {
  func.func @_copy_kernel(%arg0: i32, %arg1: memref<16x128xf32, #tpu.memory_space<vmem>>, %arg2: memref<16x128xf32, #tpu.memory_space<vmem>>) attributes {dimension_semantics = [#tpu.dimension_semantics<parallel>], iteration_bounds = array<i64: 1>, scalar_prefetch = 0 : i64, scratch_operands = 0 : i64, tpu.core_type = #tpu.core_type<tc>, window_params = [{transform_indices = @transform_0, window_bounds = array<i64: 16, 128>}, {transform_indices = @transform_1, window_bounds = array<i64: 16, 128>}]} {
    %c0 = arith.constant 0 : index
    %c0_0 = arith.constant 0 : index
    %0 = vector.load %arg1[%c0, %c0_0] : memref<16x128xf32, #tpu.memory_space<vmem>>, vector<16x128xf32>
    %c0_1 = arith.constant 0 : index
    %c0_2 = arith.constant 0 : index
    %1 = vector.load %arg2[%c0_1, %c0_2] : memref<16x128xf32, #tpu.memory_space<vmem>>, vector<16x128xf32>
    tpu.vector_store %arg2[%c0_1, %c0_2], %0 {strides = array<i32>} : memref<16x128xf32, #tpu.memory_space<vmem>>, vector<16x128xf32>,
    return
  }
  func.func @transform_0(%arg0: i32) -> (i32, i32) {
    %c0_i32 = arith.constant 0 : i32
    %c0_i32_0 = arith.constant 0 : i32
    return %arg0, %c0_i32 : i32, i32
  }
  func.func @transform_1(%arg0: i32) -> (i32, i32) {
    %c0_i32 = arith.constant 0 : i32
    %c0_i32_0 = arith.constant 0 : i32
    return %arg0, %c0_i32 : i32, i32
  }
}

</mosaic_0001>

<llo_original>
// kernel: tpu_custom_call.1
$region0: #{tpu_custom_call.1}
  #allocation0 [shape = 'u32[]', space=smem, size = 0x4, offset = 0x4, fixed_abs, tag = 'smem constant byte address 0x4 - core index']
  #allocation1 [shape = 'u32[72,128]{1,0:T(1,128)}', space=vmem, size = 0x9000, scoped, tag = 'internal scratch']
  %s0 = inlined_call_operand.hbm [shape: f32[16,128], index: 0, kind: input, shape index: {}]
  %s1 = inlined_call_operand.hbm [shape: f32[16,128], index: 1, kind: output, shape index: {}]
  %s2 = sld [smem:[#allocation0]]
  $region18: #{tpu_custom_call.1} parent=0
    _
  %s4 = ssub.s32 1, %s2
  %s5 = scalar_select 0, %s4, %s2
  $region1: #{tpu_custom_call.1} parent=0
    #allocation2 [shape = 'u8[8192]{0}', space=vmem, size = 0x2000, scoped, tag = 'input window, operand 0, single buffered']
    #allocation3 [shape = 's32[1]{0}', space=sflag, size = 0x4, scoped, tag = 'scoped memory for tpu_custom_call.1']
    #allocation4 [shape = 's32[1]{0}', space=sflag, size = 0x4, scoped, tag = 'scoped memory for tpu_custom_call.1']
    #allocation5 [shape = 'u8[8192]{0}', space=vmem, size = 0x2000, scoped, tag = 'output window, operand 0, single buffered']
    %6 = vsyncpa [#allocation3], 0
    %7 = vsyncpa [#allocation4], 0
    // Predicated region
    $region2: #{tpu_custom_call.1} parent=1 // pred_check
      _
    $region3: #{tpu_custom_call.1} parent=1 // pred_check_branch
      %9 = sbr.rel (0) target = $region5
    $region4: #{tpu_custom_call.1} parent=1 // pred_region
      %11 = vsyncadd [#allocation3], 0
      %s12 = sshll.u32 %s0, 4
      %s13 = int_to_ptr.hbm [resolvable:$true] %s12
      %s14 = sshll.u32 [#allocation2], 4
      %s15 = int_to_ptr.vmem [resolvable:$true] %s14
      %20 = dma.hbm_to_vmem [thread:$0]  %s13, 256, %s15, [#allocation3], 128, 128, 8
    $region5: #{tpu_custom_call.1} parent=1 // pred_fallthru
      _
    // Predicated region
    $region6: #{tpu_custom_call.1} parent=1 // pred_check
      _
    $region7: #{tpu_custom_call.1} parent=1 // pred_check_branch
      %22 = sbr.rel (0) target = $region9
    $region8: #{tpu_custom_call.1} parent=1 // pred_region
      %24 = dma.done [#allocation3], 256
    $region9: #{tpu_custom_call.1} parent=1 // pred_fallthru
      _
    %v25 = vld [vmem:[#allocation2] sm:$0xff]
    %v26 = vld [vmem:[#allocation2 + $0x8] sm:$0xff]
    %27 = vst [vmem:[#allocation5] sm:$0xff] %v25
    %28 = vst [vmem:[#allocation5 + $0x8] sm:$0xff] %v26
    // Predicated region
    $region10: #{tpu_custom_call.1} parent=1 // pred_check
      _
    $region11: #{tpu_custom_call.1} parent=1 // pred_check_branch
      %30 = sbr.rel (0) target = $region13
    $region12: #{tpu_custom_call.1} parent=1 // pred_region
      %32 = vsyncadd [#allocation4], 0
      %s33 = sshll.u32 [#allocation5], 4
      %s34 = int_to_ptr.vmem [resolvable:$true] %s33
      %s35 = sshll.u32 %s1, 4
      %s36 = int_to_ptr.hbm [resolvable:$true] %s35
      %41 = dma.vmem_to_hbm [thread:$0]  %s34, 256, %s36, [#allocation4], 128, 128, 8
    $region13: #{tpu_custom_call.1} parent=1 // pred_fallthru
      _
    // Predicated region
    $region14: #{tpu_custom_call.1} parent=1 // pred_check
      _
    $region15: #{tpu_custom_call.1} parent=1 // pred_check_branch
      %43 = sbr.rel (0) target = $region17
    $region16: #{tpu_custom_call.1} parent=1 // pred_region
      %45 = dma.done [#allocation4], 256
    $region17: #{tpu_custom_call.1} parent=1 // pred_fallthru
      _
    %46 = vsyncpa [#allocation3], 1
    %47 = vsyncpa [#allocation4], 1

</llo_original>
